<compile_context>
chip_gen: v6e
topology: v6e:2x2x1
jax: 0.10.0
libtpu: 0.0.40
codegen_flags: <defaults>
</compile_context>

<pallas_src>
import jax
import jax.numpy as jnp
from jax.experimental import pallas as pl
from jax.experimental.pallas import tpu as pltpu


# ----------------------------------------------------------------------------
# Pallas kernel: masked pooling (accumulated over sequence tiles) + LayerNorm
# + fused linear heads, lane-dense packed output.
# ----------------------------------------------------------------------------
def rnd_head_kernel(emb_ref, mask_ref, wgs_ref, bgs_ref, wh_ref, bh_ref,
                    embed_ref, packed_ref, msum_ref, denom_ref):
    k = pl.program_id(1)                      # sequence (reduction) grid axis

    @pl.when(k == 0)
    def _init():
        msum_ref[...] = jnp.zeros_like(msum_ref)
        denom_ref[...] = jnp.zeros_like(denom_ref)

    # --- accumulate masked sum over this sequence tile (f32 accumulation) ---
    emb = emb_ref[...].astype(jnp.float32)    # [TB, TS, D]
    m = mask_ref[...].astype(jnp.float32)     # [TB, TS, 1]  (lane-broadcasts)
    msum_ref[...] += jnp.sum(emb * m, axis=1)     # [TB, D]
    denom_ref[...] += jnp.sum(m, axis=1)          # [TB, 1]

    @pl.when(k == pl.num_programs(1) - 1)
    def _finalize():
        # masked mean pool; guard fully-padded rows; divide on the EUP slot
        denom = jnp.maximum(denom_ref[...], 1.0)
        pooled = msum_ref[...] * pl.reciprocal(denom, approx=True)   # [TB, D]

        # LayerNorm (gamma = 1, beta = 0), like BERT's final hidden-state LN
        mu = jnp.mean(pooled, axis=-1, keepdims=True)
        var = jnp.mean((pooled - mu) ** 2, axis=-1, keepdims=True)
        bert_embedding = (pooled - mu) * jax.lax.rsqrt(var + 1e-12)
        embed_ref[...] = bert_embedding.astype(embed_ref.dtype)

        # General|Specific encoders fused: Linear(768 -> 2H) + Tanh
        gs = jnp.tanh(
            jnp.dot(bert_embedding, wgs_ref[...],
                    preferred_element_type=jnp.float32) + bgs_ref[...])

        # cls + task classifiers fused into one Linear(2H -> n_class+n_tasks):
        #   heads[:, :NC]  = cat([g, s]) @ Wc + bc
        #   heads[:, NC:]  = s @ Wt + bt       (zero block for g)
        heads = (jnp.dot(gs, wh_ref[...], preferred_element_type=jnp.float32)
                 + bh_ref[...])

        two_h = gs.shape[-1]
        nh = heads.shape[-1]
        packed_ref[...] = jnp.zeros_like(packed_ref)   # zero padding lanes
        packed_ref[:, 0:two_h] = gs
        packed_ref[:, two_h:two_h + nh] = heads


# ----------------------------------------------------------------------------
# Tile selection honoring the (8, 128) BlockSpec constraint.
# ----------------------------------------------------------------------------
def _pick_tiles(batch, seq, emb_itemsize, target_block_bytes=4 << 20):
    d = 768
    # sequence tile: full S if small, otherwise a 128-aligned divisor of S
    if seq <= 512:
        ts = seq
    else:
        ts = 512
        while ts > 128 and seq % ts != 0:
            ts -= 128
        if seq % ts != 0:
            ts = seq
    # batch tile: as many rows as fit the byte budget; 8-aligned divisor of B
    rows = max(1, target_block_bytes // (ts * d * emb_itemsize))
    if batch <= 8 or batch <= rows:
        tb = batch
    else:
        tb = max(8, min(batch, (rows // 8) * 8))
        while tb > 8 and batch % tb != 0:
            tb -= 8
        if batch % tb != 0:
            tb = batch
    return tb, ts


# ----------------------------------------------------------------------------
# Wrapper: host-side weight fusion + pallas_call with grid/BlockSpecs.
# ----------------------------------------------------------------------------
def rnd_head(emb, mask, params):
    """emb: [B, S, 768] (bf16 or f32), mask: [B, S]. Returns the 5 outputs."""
    B, S, D = emb.shape
    H = params["Wg"].shape[1]
    NC = params["Wc"].shape[1]
    NT = params["Wt"].shape[1]
    two_h = 2 * H
    nh = NC + NT
    pack_w = max(128, ((two_h + nh + 127) // 128) * 128)  # lane-dense slab

    # ---- host-side weight fusion (no concat inside the kernel) ----
    wgs = jnp.concatenate([params["Wg"], params["Ws"]], axis=1)   # [D, 2H]
    bgs = jnp.concatenate([params["bg"], params["bs"]], axis=1)   # [1, 2H]
    wh = jnp.zeros((two_h, nh), jnp.float32)
    wh = wh.at[:, :NC].set(params["Wc"])        # cls  = cat([g, s]) @ Wc + bc
    wh = wh.at[H:, NC:].set(params["Wt"])       # task = s @ Wt + bt
    bh = jnp.concatenate([params["bc"], params["bt"]], axis=1)    # [1, NC+NT]

    mask3 = mask.reshape(B, S, 1).astype(jnp.float32)

    itemsize = emb.dtype.itemsize
    TB, TS = _pick_tiles(B, S, itemsize)
    grid = (pl.cdiv(B, TB), pl.cdiv(S, TS))

    # VMEM budget: double-buffered inputs + resident weights/outputs/scratch.
    emb_blk = TB * TS * D * itemsize
    mask_blk = TB * TS * 128 * 4                # lane-padded estimate
    w_bytes = (D * two_h + two_h + two_h * nh + nh) * 4
    out_bytes = (TB * D + TB * pack_w) * 4
    scr_bytes = (TB * D + TB * 128) * 4
    vmem_limit = int(min(max(2 * (emb_blk + mask_blk)
                             + 2 * (w_bytes + out_bytes)
                             + scr_bytes + (8 << 20), 32 << 20), 64 << 20))

    cost = pl.CostEstimate(
        flops=2 * B * S * D + 6 * B * D + 2 * B * D * two_h + 2 * B * two_h * nh,
        transcendentals=B * two_h + 2 * B,
        bytes_accessed=(B * S * D * itemsize + B * S * 4 + w_bytes
                        + B * D * 4 + B * pack_w * 4),
    )

    grid_spec = pltpu.PrefetchScalarGridSpec(
        num_scalar_prefetch=0,
        grid=grid,
        in_specs=[
            pl.BlockSpec((TB, TS, D), lambda i, k: (i, k, 0)),   # emb tile
            pl.BlockSpec((TB, TS, 1), lambda i, k: (i, k, 0)),   # mask tile
            pl.BlockSpec((D, two_h), lambda i, k: (0, 0)),       # Wg|Ws (resident)
            pl.BlockSpec((1, two_h), lambda i, k: (0, 0)),       # bg|bs
            pl.BlockSpec((two_h, nh), lambda i, k: (0, 0)),      # fused cls/task W
            pl.BlockSpec((1, nh), lambda i, k: (0, 0)),          # fused cls/task b
        ],
        out_specs=[
            pl.BlockSpec((TB, D), lambda i, k: (i, 0)),          # bert_embedding
            pl.BlockSpec((TB, pack_w), lambda i, k: (i, 0)),     # packed heads
        ],
        scratch_shapes=[
            pltpu.VMEM((TB, D), jnp.float32),   # msum accumulator
            pltpu.VMEM((TB, 1), jnp.float32),   # mask-count accumulator
        ],
    )

    bert_embedding, packed = pl.pallas_call(
        rnd_head_kernel,
        out_shape=(
            jax.ShapeDtypeStruct((B, D), jnp.float32),
            jax.ShapeDtypeStruct((B, pack_w), jnp.float32),
        ),
        grid_spec=grid_spec,
        compiler_params=pltpu.CompilerParams(
            dimension_semantics=("parallel", "arbitrary"),
            vmem_limit_bytes=vmem_limit,
        ),
        cost_estimate=cost,
    )(emb, mask3, wgs, bgs, wh, bh)

    general = packed[:, 0:H]
    specific = packed[:, H:two_h]
    cls_pred = packed[:, two_h:two_h + NC]
    task_pred = packed[:, two_h + NC:two_h + NC + NT]
    return general, specific, cls_pred, task_pred, bert_embedding


# ----------------------------------------------------------------------------
# Plain-JAX glue: get_tokens_id + synthetic embedding lookup (gathers).
# ----------------------------------------------------------------------------
def get_tokens_id(x):
    """JAX version of torch get_tokens_id: 0 up to & incl. first 102, 1 after.
    NOTE: torch raises if a row has no 102; here such a row gets type 1
    everywhere except position 0."""
    first_seq = jnp.argmax((x == 102).astype(jnp.int32), axis=1)      # [B]
    pos = jnp.arange(x.shape[1], dtype=jnp.int32)[None, :]            # [1, S]
    return (pos > first_seq[:, None]).astype(jnp.int32)               # [B, S]


def embed_tokens(x, tokens_ids, tok_emb, pos_emb, type_emb):
    emb = tok_emb[x] + pos_emb[None, :, :] + type_emb[tokens_ids]     # [B, S, D]
    return emb.astype(jnp.bfloat16)     # bf16 in HBM; kernel upcasts per tile


# ----------------------------------------------------------------------------
# Driver
# ----------------------------------------------------------------------------
if __name__ == "__main__":
    B, S, D = 2, 8, 768          # D must be 768 (BERT hidden size)
    H = 32                       # hidden_size
    N_CLASS, N_TASKS = 4, 3
    VOCAB = 512                  # small synthetic vocab (real BERT uses 30522)

    key = jax.random.PRNGKey(0)
    keys = jax.random.split(key, 10)

    tok_emb = 0.02 * jax.random.normal(keys[0], (VOCAB, D), jnp.float32)
    pos_emb = 0.02 * jax.random.normal(keys[1], (S, D), jnp.float32)
    type_emb = 0.02 * jax.random.normal(keys[2], (2, D), jnp.float32)

    params = {
        "Wg": 0.05 * jax.random.normal(keys[3], (D, H), jnp.float32),
        "bg": jnp.zeros((1, H), jnp.float32),
        "Ws": 0.05 * jax.random.normal(keys[4], (D, H), jnp.float32),
        "bs": jnp.zeros((1, H), jnp.float32),
        "Wt": 0.05 * jax.random.normal(keys[5], (H, N_TASKS), jnp.float32),
        "bt": jnp.zeros((1, N_TASKS), jnp.float32),
        "Wc": 0.05 * jax.random.normal(keys[6], (2 * H, N_CLASS), jnp.float32),
        "bc": jnp.zeros((1, N_CLASS), jnp.float32),
    }

    # deterministic inputs: token ids (each row contains a 102 = [SEP]) and mask
    x = jax.random.randint(keys[7], (B, S), 103, VOCAB, dtype=jnp.int32)
    x = x.at[:, 0].set(101)          # CLS-like
    x = x.at[0, 3].set(102)          # first [SEP] in row 0
    x = x.at[1, 5].set(102)          # first [SEP] in row 1
    mask = jnp.ones((B, S), jnp.float32)
    mask = mask.at[1, 6:].set(0.0)   # some padding in row 1

    tokens_ids = get_tokens_id(x)
    emb = embed_tokens(x, tokens_ids, tok_emb, pos_emb, type_emb)

    general, specific, cls_pred, task_pred, bert_embedding = rnd_head(
        emb, mask, params)
    jax.block_until_ready((general, specific, cls_pred, task_pred,
                           bert_embedding))

    assert general.shape == (B, H)
    assert specific.shape == (B, H)
    assert cls_pred.shape == (B, N_CLASS)
    assert task_pred.shape == (B, N_TASKS)
    assert bert_embedding.shape == (B, D)
    print("KERNEL_OK")
</pallas_src>

<mosaic_0001>
module attributes {stable_mosaic.version = 11 : i64} {
  func.func @rnd_head_kernel(%arg0: i32, %arg1: i32, %arg2: memref<2x8x768xbf16, #tpu.memory_space<vmem>>, %arg3: memref<2x8x1xf32, #tpu.memory_space<vmem>>, %arg4: memref<768x64xf32, #tpu.memory_space<vmem>>, %arg5: memref<1x64xf32, #tpu.memory_space<vmem>>, %arg6: memref<64x7xf32, #tpu.memory_space<vmem>>, %arg7: memref<1x7xf32, #tpu.memory_space<vmem>>, %arg8: memref<2x768xf32, #tpu.memory_space<vmem>>, %arg9: memref<2x128xf32, #tpu.memory_space<vmem>>, %arg10: memref<2x768xf32, #tpu.memory_space<vmem>>, %arg11: memref<2x1xf32, #tpu.memory_space<vmem>>) attributes {dimension_semantics = [#tpu.dimension_semantics<parallel>, #tpu.dimension_semantics<arbitrary>], iteration_bounds = array<i64: 1, 1>, scalar_prefetch = 0 : i64, scratch_operands = 2 : i64, tpu.core_type = #tpu.core_type<tc>, window_params = [{transform_indices = @transform_0, window_bounds = array<i64: 2, 8, 768>}, {transform_indices = @transform_1, window_bounds = array<i64: 2, 8, 1>}, {pipeline_mode = #tpu.pipeline_mode<synchronous>, transform_indices = @transform_2, window_bounds = array<i64: 768, 64>}, {pipeline_mode = #tpu.pipeline_mode<synchronous>, transform_indices = @transform_3, window_bounds = array<i64: 1, 64>}, {pipeline_mode = #tpu.pipeline_mode<synchronous>, transform_indices = @transform_4, window_bounds = array<i64: 64, 7>}, {pipeline_mode = #tpu.pipeline_mode<synchronous>, transform_indices = @transform_5, window_bounds = array<i64: 1, 7>}, {transform_indices = @transform_6, window_bounds = array<i64: 2, 768>}, {transform_indices = @transform_7, window_bounds = array<i64: 2, 128>}]} {
    %c0_i32 = arith.constant 0 : i32
    %0 = arith.cmpi eq, %arg1, %c0_i32 : i32
    %1 = arith.extui %0 : i1 to i32
    %c0_i32_0 = arith.constant 0 : i32
    %2 = arith.cmpi ne, %1, %c0_i32_0 : i32
    scf.if %2 {
      %cst_17 = arith.constant 0.000000e+00 : f32
      %19 = vector.broadcast %cst_17 : f32 to vector<2x768xf32>
      %c0_18 = arith.constant 0 : index
      %c0_19 = arith.constant 0 : index
      %20 = vector.load %arg10[%c0_18, %c0_19] : memref<2x768xf32, #tpu.memory_space<vmem>>, vector<2x768xf32>
      tpu.vector_store %arg10[%c0_18, %c0_19], %19 {strides = array<i32>} : memref<2x768xf32, #tpu.memory_space<vmem>>, vector<2x768xf32>,
      %cst_20 = arith.constant 0.000000e+00 : f32
      %21 = vector.broadcast %cst_20 : f32 to vector<2x1xf32>
      %c0_21 = arith.constant 0 : index
      %c0_22 = arith.constant 0 : index
      %22 = vector.load %arg11[%c0_21, %c0_22] : memref<2x1xf32, #tpu.memory_space<vmem>>, vector<2x1xf32>
      tpu.vector_store %arg11[%c0_21, %c0_22], %21 {strides = array<i32>} : memref<2x1xf32, #tpu.memory_space<vmem>>, vector<2x1xf32>,
    } else {
    }
    %c0 = arith.constant 0 : index
    %c0_1 = arith.constant 0 : index
    %c0_2 = arith.constant 0 : index
    %3 = vector.load %arg2[%c0, %c0_1, %c0_2] : memref<2x8x768xbf16, #tpu.memory_space<vmem>>, vector<2x8x768xbf16>
    %4 = arith.extf %3 : vector<2x8x768xbf16> to vector<2x8x768xf32>
    %c0_3 = arith.constant 0 : index
    %c0_4 = arith.constant 0 : index
    %c0_5 = arith.constant 0 : index
    %5 = vector.load %arg3[%c0_3, %c0_4, %c0_5] : memref<2x8x1xf32, #tpu.memory_space<vmem>>, vector<2x8x1xf32>
    %c0_6 = arith.constant 0 : index
    %c0_7 = arith.constant 0 : index
    %6 = vector.load %arg10[%c0_6, %c0_7] : memref<2x768xf32, #tpu.memory_space<vmem>>, vector<2x768xf32>
    %7 = vector.broadcast %5 : vector<2x8x1xf32> to vector<2x8x768xf32>
    %8 = arith.mulf %4, %7 : vector<2x8x768xf32>
    %cst = arith.constant dense<0.000000e+00> : vector<2x768xf32>
    %9 = vector.multi_reduction <add>, %8, %cst [1] : vector<2x8x768xf32> to vector<2x768xf32>
    %10 = arith.addf %6, %9 : vector<2x768xf32>
    %c0_8 = arith.constant 0 : index
    %c0_9 = arith.constant 0 : index
    %11 = vector.load %arg10[%c0_8, %c0_9] : memref<2x768xf32, #tpu.memory_space<vmem>>, vector<2x768xf32>
    tpu.vector_store %arg10[%c0_8, %c0_9], %10 {strides = array<i32>} : memref<2x768xf32, #tpu.memory_space<vmem>>, vector<2x768xf32>,
    %c0_10 = arith.constant 0 : index
    %c0_11 = arith.constant 0 : index
    %12 = vector.load %arg11[%c0_10, %c0_11] : memref<2x1xf32, #tpu.memory_space<vmem>>, vector<2x1xf32>
    %cst_12 = arith.constant dense<0.000000e+00> : vector<2x1xf32>
    %13 = vector.multi_reduction <add>, %5, %cst_12 [1] : vector<2x8x1xf32> to vector<2x1xf32>
    %14 = arith.addf %12, %13 : vector<2x1xf32>
    %c0_13 = arith.constant 0 : index
    %c0_14 = arith.constant 0 : index
    %15 = vector.load %arg11[%c0_13, %c0_14] : memref<2x1xf32, #tpu.memory_space<vmem>>, vector<2x1xf32>
    tpu.vector_store %arg11[%c0_13, %c0_14], %14 {strides = array<i32>} : memref<2x1xf32, #tpu.memory_space<vmem>>, vector<2x1xf32>,
    %c0_i32_15 = arith.constant 0 : i32
    %16 = arith.cmpi eq, %arg1, %c0_i32_15 : i32
    %17 = arith.extui %16 : i1 to i32
    %c0_i32_16 = arith.constant 0 : i32
    %18 = arith.cmpi ne, %17, %c0_i32_16 : i32
    scf.if %18 {
      %c0_17 = arith.constant 0 : index
      %c0_18 = arith.constant 0 : index
      %19 = vector.load %arg11[%c0_17, %c0_18] : memref<2x1xf32, #tpu.memory_space<vmem>>, vector<2x1xf32>
      %cst_19 = arith.constant 1.000000e+00 : f32
      %20 = vector.broadcast %cst_19 : f32 to vector<2x1xf32>
      %21 = arith.maximumf %19, %20 : vector<2x1xf32>
      %c0_20 = arith.constant 0 : index
      %c0_21 = arith.constant 0 : index
      %22 = vector.load %arg10[%c0_20, %c0_21] : memref<2x768xf32, #tpu.memory_space<vmem>>, vector<2x768xf32>
      %23 = tpu.reciprocal %21 {approx = true} : vector<2x1xf32> -> vector<2x1xf32>
      %24 = vector.broadcast %23 : vector<2x1xf32> to vector<2x768xf32>
      %25 = arith.mulf %22, %24 : vector<2x768xf32>
      %cst_22 = arith.constant dense<0.000000e+00> : vector<2xf32>
      %26 = vector.multi_reduction <add>, %25, %cst_22 [1] : vector<2x768xf32> to vector<2xf32>
      %27 = vector.shape_cast %26 : vector<2xf32> to vector<2x1xf32>
      %cst_23 = arith.constant 7.680000e+02 : f32
      %28 = vector.broadcast %cst_23 : f32 to vector<2x1xf32>
      %29 = arith.divf %27, %28 : vector<2x1xf32>
      %30 = vector.broadcast %29 : vector<2x1xf32> to vector<2x768xf32>
      %31 = arith.subf %25, %30 : vector<2x768xf32>
      %32 = arith.mulf %31, %31 : vector<2x768xf32>
      %cst_24 = arith.constant dense<0.000000e+00> : vector<2xf32>
      %33 = vector.multi_reduction <add>, %32, %cst_24 [1] : vector<2x768xf32> to vector<2xf32>
      %34 = vector.shape_cast %33 : vector<2xf32> to vector<2x1xf32>
      %cst_25 = arith.constant 7.680000e+02 : f32
      %35 = vector.broadcast %cst_25 : f32 to vector<2x1xf32>
      %36 = arith.divf %34, %35 : vector<2x1xf32>
      %37 = vector.broadcast %29 : vector<2x1xf32> to vector<2x768xf32>
      %38 = arith.subf %25, %37 : vector<2x768xf32>
      %cst_26 = arith.constant 9.99999996E-13 : f32
      %39 = vector.broadcast %cst_26 : f32 to vector<2x1xf32>
      %40 = arith.addf %36, %39 : vector<2x1xf32>
      %41 = math.rsqrt %40 : vector<2x1xf32>
      %42 = vector.broadcast %41 : vector<2x1xf32> to vector<2x768xf32>
      %43 = arith.mulf %38, %42 : vector<2x768xf32>
      %c0_27 = arith.constant 0 : index
      %c0_28 = arith.constant 0 : index
      %44 = vector.load %arg8[%c0_27, %c0_28] : memref<2x768xf32, #tpu.memory_space<vmem>>, vector<2x768xf32>
      tpu.vector_store %arg8[%c0_27, %c0_28], %43 {strides = array<i32>} : memref<2x768xf32, #tpu.memory_space<vmem>>, vector<2x768xf32>,
      %c0_29 = arith.constant 0 : index
      %c0_30 = arith.constant 0 : index
      %45 = vector.load %arg4[%c0_29, %c0_30] : memref<768x64xf32, #tpu.memory_space<vmem>>, vector<768x64xf32>
      %cst_31 = arith.constant dense<0.000000e+00> : vector<2x64xf32>
      %46 = tpu.matmul %43, %45, %cst_31 {dimension_numbers = #tpu.dot_dimension_numbers<[1], [0], [0], [1], [0, 0, 1, 1], [], []>} : vector<2x768xf32>, vector<768x64xf32>, vector<2x64xf32> -> vector<2x64xf32>
      %c0_32 = arith.constant 0 : index
      %c0_33 = arith.constant 0 : index
      %47 = vector.load %arg5[%c0_32, %c0_33] : memref<1x64xf32, #tpu.memory_space<vmem>>, vector<1x64xf32>
      %48 = vector.broadcast %47 : vector<1x64xf32> to vector<2x64xf32>
      %49 = arith.addf %46, %48 : vector<2x64xf32>
      %50 = math.tanh %49 : vector<2x64xf32>
      %c0_34 = arith.constant 0 : index
      %c0_35 = arith.constant 0 : index
      %51 = vector.load %arg6[%c0_34, %c0_35] : memref<64x7xf32, #tpu.memory_space<vmem>>, vector<64x7xf32>
      %cst_36 = arith.constant dense<0.000000e+00> : vector<2x7xf32>
      %52 = tpu.matmul %50, %51, %cst_36 {dimension_numbers = #tpu.dot_dimension_numbers<[1], [0], [0], [1], [0, 0, 1, 1], [], []>} : vector<2x64xf32>, vector<64x7xf32>, vector<2x7xf32> -> vector<2x7xf32>
      %c0_37 = arith.constant 0 : index
      %c0_38 = arith.constant 0 : index
      %53 = vector.load %arg7[%c0_37, %c0_38] : memref<1x7xf32, #tpu.memory_space<vmem>>, vector<1x7xf32>
      %54 = vector.broadcast %53 : vector<1x7xf32> to vector<2x7xf32>
      %55 = arith.addf %52, %54 : vector<2x7xf32>
      %cst_39 = arith.constant 0.000000e+00 : f32
      %56 = vector.broadcast %cst_39 : f32 to vector<2x128xf32>
      %c0_40 = arith.constant 0 : index
      %c0_41 = arith.constant 0 : index
      %57 = vector.load %arg9[%c0_40, %c0_41] : memref<2x128xf32, #tpu.memory_space<vmem>>, vector<2x128xf32>
      tpu.vector_store %arg9[%c0_40, %c0_41], %56 {strides = array<i32>} : memref<2x128xf32, #tpu.memory_space<vmem>>, vector<2x128xf32>,
      %c0_42 = arith.constant 0 : index
      %c0_43 = arith.constant 0 : index
      %58 = vector.load %arg9[%c0_42, %c0_43] : memref<2x128xf32, #tpu.memory_space<vmem>>, vector<2x64xf32>
      tpu.vector_store %arg9[%c0_42, %c0_43], %50 {strides = array<i32>} : memref<2x128xf32, #tpu.memory_space<vmem>>, vector<2x64xf32>,
      %c0_44 = arith.constant 0 : index
      %c64 = arith.constant 64 : index
      %59 = vector.load %arg9[%c0_44, %c64] : memref<2x128xf32, #tpu.memory_space<vmem>>, vector<2x7xf32>
      tpu.vector_store %arg9[%c0_44, %c64], %55 {strides = array<i32>} : memref<2x128xf32, #tpu.memory_space<vmem>>, vector<2x7xf32>,
    } else {
    }
    return
  }
  func.func @transform_0(%arg0: i32, %arg1: i32) -> (i32, i32, i32) {
    %c0_i32 = arith.constant 0 : i32
    %c0_i32_0 = arith.constant 0 : i32
    return %arg0, %arg1, %c0_i32 : i32, i32, i32
  }
  func.func @transform_1(%arg0: i32, %arg1: i32) -> (i32, i32, i32) {
    %c0_i32 = arith.constant 0 : i32
    %c0_i32_0 = arith.constant 0 : i32
    return %arg0, %arg1, %c0_i32 : i32, i32, i32
  }
  func.func @transform_2(%arg0: i32, %arg1: i32) -> (i32, i32) {
    %c0_i32 = arith.constant 0 : i32
    %c0_i32_0 = arith.constant 0 : i32
    %c0_i32_1 = arith.constant 0 : i32
    return %c0_i32, %c0_i32_0 : i32, i32
  }
  func.func @transform_3(%arg0: i32, %arg1: i32) -> (i32, i32) {
    %c0_i32 = arith.constant 0 : i32
    %c0_i32_0 = arith.constant 0 : i32
    %c0_i32_1 = arith.constant 0 : i32
    return %c0_i32, %c0_i32_0 : i32, i32
  }
  func.func @transform_4(%arg0: i32, %arg1: i32) -> (i32, i32) {
    %c0_i32 = arith.constant 0 : i32
    %c0_i32_0 = arith.constant 0 : i32
    %c0_i32_1 = arith.constant 0 : i32
    return %c0_i32, %c0_i32_0 : i32, i32
  }
  func.func @transform_5(%arg0: i32, %arg1: i32) -> (i32, i32) {
    %c0_i32 = arith.constant 0 : i32
    %c0_i32_0 = arith.constant 0 : i32
    %c0_i32_1 = arith.constant 0 : i32
    return %c0_i32, %c0_i32_0 : i32, i32
  }
  func.func @transform_6(%arg0: i32, %arg1: i32) -> (i32, i32) {
    %c0_i32 = arith.constant 0 : i32
    %c0_i32_0 = arith.constant 0 : i32
    return %arg0, %c0_i32 : i32, i32
  }
  func.func @transform_7(%arg0: i32, %arg1: i32) -> (i32, i32) {
    %c0_i32 = arith.constant 0 : i32
    %c0_i32_0 = arith.constant 0 : i32
    return %arg0, %c0_i32 : i32, i32
  }
}

</mosaic_0001>

<llo_original>
// kernel: tpu_custom_call.1
$region0: #{tpu_custom_call.1}
  #allocation0 [shape = 'u32[]', space=smem, size = 0x4, offset = 0x4, fixed_abs, tag = 'smem constant byte address 0x4 - core index']
  #allocation1 [shape = 'u32[144,128]{1,0:T(1,128)}', space=vmem, size = 0x12000, scoped, tag = 'internal scratch']
  #allocation2 [shape = 'f32[2,768]{1,0:T(2,128)}', space=vmem, size = 0x1800, scoped, tag = 'scratch operand']
  #allocation3 [shape = 'f32[2,1]{1,0:T(2,128)}', space=vmem, size = 0x400, scoped, tag = 'scratch operand']
  %s0 = inlined_call_operand.vmem [shape: bf16[2,8,768], index: 0, kind: input, shape index: {}]
  %s1 = inlined_call_operand.vmem [shape: f32[2,8,1], index: 1, kind: input, shape index: {}]
  %s2 = inlined_call_operand.vmem [shape: f32[768,64], index: 2, kind: input, shape index: {}]
  %s3 = inlined_call_operand.vmem [shape: f32[1,64], index: 3, kind: input, shape index: {}]
  %s4 = inlined_call_operand.vmem [shape: f32[64,7], index: 4, kind: input, shape index: {}]
  %s5 = inlined_call_operand.vmem [shape: f32[1,7], index: 5, kind: input, shape index: {}]
  %s6 = inlined_call_operand.hbm [shape: f32[2,768], index: 6, kind: output, shape index: {0}]
  %s7 = inlined_call_operand.hbm [shape: f32[2,128], index: 7, kind: output, shape index: {1}]
  %8 = xla_tuple %s6, %s7
  %s9 = sld [smem:[#allocation0]]
  $region50: #{tpu_custom_call.1} parent=0
    _
  %s11 = ssub.s32 1, %s9
  %s12 = scalar_select 0, %s11, %s9
  $region1: #{tpu_custom_call.1} parent=0
    #allocation4 [shape = 'u8[6144]{0}', space=vmem, size = 0x1800, scoped, tag = 'output window, operand 0, single buffered']
    #allocation5 [shape = 's32[1]{0}', space=sflag, size = 0x4, scoped, tag = 'scoped memory for tpu_custom_call.1']
    #allocation6 [shape = 'u8[1024]{0}', space=vmem, size = 0x400, scoped, tag = 'output window, operand 1, single buffered']
    #allocation7 [shape = 's32[1]{0}', space=sflag, size = 0x4, scoped, tag = 'scoped memory for tpu_custom_call.1']
    %13 = vsyncpa [#allocation5], 0
    %14 = vsyncpa [#allocation7], 0
    // Predicated region
    $region2: #{tpu_custom_call.1} parent=1 // pred_check
      _
    $region3: #{tpu_custom_call.1} parent=1 // pred_check_branch
      %16 = sbr.rel (0) target = $region5
    $region4: #{tpu_custom_call.1} parent=1 // pred_region
      _
    $region5: #{tpu_custom_call.1} parent=1 // pred_fallthru
      _
    // Predicated region
    $region6: #{tpu_custom_call.1} parent=1 // pred_check
      _
    $region7: #{tpu_custom_call.1} parent=1 // pred_check_branch
      %18 = sbr.rel (0) target = $region9
    $region8: #{tpu_custom_call.1} parent=1 // pred_region
      _
    $region9: #{tpu_custom_call.1} parent=1 // pred_fallthru
      _
    // Predicated region
    $region10: #{tpu_custom_call.1} parent=1 // pred_check
      _
    $region11: #{tpu_custom_call.1} parent=1 // pred_check_branch
      %20 = sbr.rel (0) target = $region13
    $region12: #{tpu_custom_call.1} parent=1 // pred_region
      _
    $region13: #{tpu_custom_call.1} parent=1 // pred_fallthru
      _
    // Predicated region
    $region14: #{tpu_custom_call.1} parent=1 // pred_check
      _
    $region15: #{tpu_custom_call.1} parent=1 // pred_check_branch
      %22 = sbr.rel (0) target = $region17
    $region16: #{tpu_custom_call.1} parent=1 // pred_region
      _
    $region17: #{tpu_custom_call.1} parent=1 // pred_fallthru
      _
    // Predicated region
    $region18: #{tpu_custom_call.1} parent=1 // pred_check
      _
    $region19: #{tpu_custom_call.1} parent=1 // pred_check_branch
      %24 = sbr.rel (0) target = $region21
    $region20: #{tpu_custom_call.1} parent=1 // pred_region
      _
    $region21: #{tpu_custom_call.1} parent=1 // pred_fallthru
      _
    // Predicated region
    $region22: #{tpu_custom_call.1} parent=1 // pred_check
      _
    $region23: #{tpu_custom_call.1} parent=1 // pred_check_branch
      %26 = sbr.rel (0) target = $region25
    $region24: #{tpu_custom_call.1} parent=1 // pred_region
      _
    $region25: #{tpu_custom_call.1} parent=1 // pred_fallthru
      _
    %p27 = scmp.eq.s32.totalorder 0, 0
    // Predicated region
    $region26: #{tpu_custom_call.1} parent=1 // pred_check
      %p28 = pneg %p27
    $region27: #{tpu_custom_call.1} parent=1 // pred_check_branch
      %30 = sbr.rel (%p28) target = $region29
    $region28: #{tpu_custom_call.1} parent=1 // pred_region
      %31 = vst [vmem:[#allocation2] sm:$0xff] 0.0
      %32 = vst [vmem:[#allocation2 + $0x8] sm:$0xf] 0.0
      %vm33 = vcmask 1024
      %34 = vst.msk [vmem:[#allocation3] sm:$0x3] %vm33, 0.0
    $region29: #{tpu_custom_call.1} parent=1 // pred_fallthru
      _
    %v35 = vld [vmem:[%s0] sm:$0xff]
    %v36 = vld [vmem:[%s0 + $0x8] sm:$0xff]
    %v37 = vld [vmem:[%s0 + $0x10] sm:$0xff]
    %v38 = vld [vmem:[%s0 + $0x18] sm:$0xff]
    %v39 = vld [vmem:[%s0 + $0x20] sm:$0xff]
    %v40 = vld [vmem:[%s0 + $0x28] sm:$0xff]
    %v41 = vunpack.c.l.bf16 %v35
    %v42 = vunpack.c.h.bf16 %v35
    %v43 = vunpack.c.l.bf16 %v36
    %v44 = vunpack.c.h.bf16 %v36
    %v45 = vunpack.c.l.bf16 %v37
    %v46 = vunpack.c.h.bf16 %v37
    %v47 = vunpack.c.l.bf16 %v38
    %v48 = vunpack.c.h.bf16 %v38
    %v49 = vunpack.c.l.bf16 %v39
    %v50 = vunpack.c.h.bf16 %v39
    %v51 = vunpack.c.l.bf16 %v40
    %v52 = vunpack.c.h.bf16 %v40
    %v53 = vld [vmem:[%s1] sm:$0xff]
    %v54 = vld [vmem:[%s1 + $0x8] sm:$0xff]
    %v55 = vld [vmem:[#allocation2] sm:$0xff]
    %v56 = vld [vmem:[#allocation2 + $0x8] sm:$0xf]
    %58 = vset.pattern.permute.xlu0 0
    %59 = vperm.xlu0 %58, %v53
    %v60 = vpop.permute.xlu0 %59
    %63 = vset.pattern.permute.xlu0 0
    %64 = vperm.xlu0 %63, %v54
    %v65 = vpop.permute.xlu0 %64
    %v67 = vmul.f32 %v41, %v60
    %v68 = vmul.f32 %v42, %v60
    %v69 = vmul.f32 %v43, %v60
    %v70 = vmul.f32 %v44, %v60
    %v71 = vmul.f32 %v45, %v60
    %v72 = vmul.f32 %v46, %v60
    %v73 = vmul.f32 %v47, %v65
    %v74 = vmul.f32 %v48, %v65
    %v75 = vmul.f32 %v49, %v65
    %v76 = vmul.f32 %v50, %v65
    %v77 = vmul.f32 %v51, %v65
    %v78 = vmul.f32 %v52, %v65
    %v79 = vrot.slane %v67, 4
    %v80 = vadd.f32 %v67, %v79
    %v81 = vrot.slane %v80, 2
    %v82 = vadd.f32 %v80, %v81
    %v83 = vrot.slane %v82, 1
    %v84 = vadd.f32 %v82, %v83
    %v85 = vrot.slane %v68, 4
    %v86 = vadd.f32 %v68, %v85
    %v87 = vrot.slane %v86, 2
    %v88 = vadd.f32 %v86, %v87
    %v89 = vrot.slane %v88, 1
    %v90 = vadd.f32 %v88, %v89
    %v91 = vrot.slane %v69, 4
    %v92 = vadd.f32 %v69, %v91
    %v93 = vrot.slane %v92, 2
    %v94 = vadd.f32 %v92, %v93
    %v95 = vrot.slane %v94, 1
    %v96 = vadd.f32 %v94, %v95
    %v97 = vrot.slane %v70, 4
    %v98 = vadd.f32 %v70, %v97
    %v99 = vrot.slane %v98, 2
    %v100 = vadd.f32 %v98, %v99
    %v101 = vrot.slane %v100, 1
    %v102 = vadd.f32 %v100, %v101
    %v103 = vrot.slane %v71, 4
    %v104 = vadd.f32 %v71, %v103
    %v105 = vrot.slane %v104, 2
    %v106 = vadd.f32 %v104, %v105
    %v107 = vrot.slane %v106, 1
    %v108 = vadd.f32 %v106, %v107
    %v109 = vrot.slane %v72, 4
    %v110 = vadd.f32 %v72, %v109
    %v111 = vrot.slane %v110, 2
    %v112 = vadd.f32 %v110, %v111
    %v113 = vrot.slane %v112, 1
    %v114 = vadd.f32 %v112, %v113
    %v115 = vrot.slane %v73, 4
    %v116 = vadd.f32 %v73, %v115
    %v117 = vrot.slane %v116, 2
    %v118 = vadd.f32 %v116, %v117
    %v119 = vrot.slane %v118, 1
    %v120 = vadd.f32 %v118, %v119
    %v121 = vrot.slane %v74, 4
    %v122 = vadd.f32 %v74, %v121
    %v123 = vrot.slane %v122, 2
    %v124 = vadd.f32 %v122, %v123
    %v125 = vrot.slane %v124, 1
    %v126 = vadd.f32 %v124, %v125
    %v127 = vrot.slane %v75, 4
    %v128 = vadd.f32 %v75, %v127
    %v129 = vrot.slane %v128, 2
    %v130 = vadd.f32 %v128, %v129
    %v131 = vrot.slane %v130, 1
    %v132 = vadd.f32 %v130, %v131
    %v133 = vrot.slane %v76, 4
    %v134 = vadd.f32 %v76, %v133
    %v135 = vrot.slane %v134, 2
    %v136 = vadd.f32 %v134, %v135
    %v137 = vrot.slane %v136, 1
    %v138 = vadd.f32 %v136, %v137
    %v139 = vrot.slane %v77, 4
    %v140 = vadd.f32 %v77, %v139
    %v141 = vrot.slane %v140, 2
    %v142 = vadd.f32 %v140, %v141
    %v143 = vrot.slane %v142, 1
    %v144 = vadd.f32 %v142, %v143
    %v145 = vrot.slane %v78, 4
    %v146 = vadd.f32 %v78, %v145
    %v147 = vrot.slane %v146, 2
    %v148 = vadd.f32 %v146, %v147
    %v149 = vrot.slane %v148, 1
    %v150 = vadd.f32 %v148, %v149
    %v163 = vcombine.low %v84, %v90
    %v164 = vcombine.low %v96, %v102
    %v166 = vunpack.c.l.s4 1983009808
    %v167 = vunpack.c.0.s8 %v166
    %v168 = vlaneseq
    %v169 = vshrl.u32 %v168, 7
    %v170 = vsub.s32 %v167, %v169
    %v171 = vrot.slane %v163, %v170
    %v173 = vunpack.c.l.s4 1983009808
    %v174 = vunpack.c.0.s8 %v173
    %v175 = vlaneseq
    %v176 = vshrl.u32 %v175, 7
    %v177 = vsub.s32 %v174, %v176
    %v178 = vrot.slane %v164, %v177
    %v179 = vcombine.low %v171, %v178
    %v180 = vcombine.low %v108, %v114
    %v182 = vunpack.c.l.s4 1983009808
    %v183 = vunpack.c.0.s8 %v182
    %v184 = vlaneseq
    %v185 = vshrl.u32 %v184, 7
    %v186 = vsub.s32 %v183, %v185
    %v187 = vrot.slane %v180, %v186
    %v188 = vcombine.low %v120, %v126
    %v189 = vcombine.low %v132, %v138
    %v191 = vunpack.c.l.s4 1983009808
    %v192 = vunpack.c.0.s8 %v191
    %v193 = vlaneseq
    %v194 = vshrl.u32 %v193, 7
    %v195 = vsub.s32 %v192, %v194
    %v196 = vrot.slane %v188, %v195
    %v198 = vunpack.c.l.s4 1983009808
    %v199 = vunpack.c.0.s8 %v198
    %v200 = vlaneseq
    %v201 = vshrl.u32 %v200, 7
    %v202 = vsub.s32 %v199, %v201
    %v203 = vrot.slane %v189, %v202
    %v204 = vcombine.low %v196, %v203
    %v205 = vcombine.low %v144, %v150
    %v207 = vunpack.c.l.s4 1983009808
    %v208 = vunpack.c.0.s8 %v207
    %v209 = vlaneseq
    %v210 = vshrl.u32 %v209, 7
    %v211 = vsub.s32 %v208, %v210
    %v212 = vrot.slane %v205, %v211
    %vm213 = vcmask 1044484
    %v214 = vsel %vm213, %v179, %v179
    %vm215 = vcmask 1046534
    %v216 = vsel %vm215, %v179, %v214
    %v217 = vrot.slane %v204, 7
    %vm218 = vcmask 1041409
    %v219 = vsel %vm218, %v217, %v216
    %vm220 = vcmask 1043459
    %v221 = vsel %vm220, %v217, %v219
    %vm222 = vcmask 1045509
    %v223 = vsel %vm222, %v217, %v221
    %vm224 = vcmask 1047559
    %v225 = vsel %vm224, %v217, %v223
    %v226 = vsel %vm213, %v187, %v187
    %v227 = vsel %vm215, %v187, %v226
    %v228 = vrot.slane %v212, 7
    %v229 = vsel %vm218, %v228, %v227
    %v230 = vsel %vm220, %v228, %v229
    %v231 = vsel %vm222, %v228, %v230
    %v232 = vsel %vm224, %v228, %v231
    %v235 = vadd.f32 %v55, %v225
    %v236 = vadd.f32 %v56, %v232
    %237 = vst [vmem:[#allocation2] sm:$0xff] %v235
    %238 = vst [vmem:[#allocation2 + $0x8] sm:$0xf] %v236
    %v239 = vld [vmem:[#allocation3] sm:$0x3]
    %vm240 = vcmask 7168
    %v241 = vsel %vm240, %v53, 0.0
    %v242 = vrot.slane %v241, 4
    %v243 = vadd.f32 %v241, %v242
    %v244 = vrot.slane %v243, 2
    %v245 = vadd.f32 %v243, %v244
    %v246 = vrot.slane %v245, 1
    %v247 = vadd.f32 %v245, %v246
    %v248 = vsel %vm240, %v54, 0.0
    %v249 = vrot.slane %v248, 4
    %v250 = vadd.f32 %v248, %v249
    %v251 = vrot.slane %v250, 2
    %v252 = vadd.f32 %v250, %v251
    %v253 = vrot.slane %v252, 1
    %v254 = vadd.f32 %v252, %v253
    %v257 = vsel %vm218, %v254, %v247
    %v259 = vadd.f32 %v239, %v257
    %vm260 = vcmask 1024
    %261 = vst.msk [vmem:[#allocation3] sm:$0x3] %vm260, %v259
    // Predicated region
    $region30: #{tpu_custom_call.1} parent=1 // pred_check
      %p262 = pneg %p27
    $region31: #{tpu_custom_call.1} parent=1 // pred_check_branch
      %264 = sbr.rel (%p262) target = $region33
    $region32: #{tpu_custom_call.1} parent=1 // pred_region
      %v265 = vld [vmem:[#allocation3] sm:$0x3]
      %v266 = vmax.f32 %v265, 1.0
      %v267 = vld [vmem:[#allocation2] sm:$0xff]
      %v268 = vld [vmem:[#allocation2 + $0x8] sm:$0xf]
      %v269 = vrcp.pop %v266
      %271 = vset.pattern.permute.xlu0 0
      %272 = vperm.xlu0 %271, %v269
      %v273 = vpop.permute.xlu0 %272
      %v275 = vunpack.c.l.s4 269488144
      %v276 = vunpack.c.0.s8 %v275
      %v277 = vlaneseq
      %v278 = vshrl.u32 %v277, 7
      %v279 = vsub.s32 %v276, %v278
      %v280 = vrot.slane %v273, %v279
      %v282 = vmul.f32 %v267, %v280
      %v283 = vmul.f32 %v268, %v280
      %v286 = vcombine.high %v282, %v282
      %v288 = vunpack.c.l.s4 1983009808
      %v289 = vunpack.c.0.s8 %v288
      %v290 = vlaneseq
      %v291 = vshrl.u32 %v290, 7
      %v292 = vsub.s32 %v289, %v291
      %v293 = vrot.slane %v282, %v292
      %v295 = vunpack.c.l.s4 1983009808
      %v296 = vunpack.c.0.s8 %v295
      %v297 = vlaneseq
      %v298 = vshrl.u32 %v297, 7
      %v299 = vsub.s32 %v296, %v298
      %v300 = vrot.slane %v286, %v299
      %v301 = vcombine.high %v293, %v293
      %v302 = vcombine.high %v300, %v300
      %v304 = vunpack.c.l.s4 1983009808
      %v305 = vunpack.c.0.s8 %v304
      %v306 = vlaneseq
      %v307 = vshrl.u32 %v306, 7
      %v308 = vsub.s32 %v305, %v307
      %v309 = vrot.slane %v283, %v308
      %v310 = vcombine.high %v309, %v309
      %vm317 = vcmask 1041408
      %v318 = vsel %vm317, %v293, 0.0
      %v319 = vsel %vm317, %v301, 0.0
      %v320 = vadd.f32 %v318, %v319
      %v321 = vsel %vm317, %v300, 0.0
      %v322 = vadd.f32 %v320, %v321
      %v323 = vsel %vm317, %v302, 0.0
      %v324 = vadd.f32 %v322, %v323
      %v325 = vsel %vm317, %v309, 0.0
      %v326 = vadd.f32 %v324, %v325
      %v327 = vsel %vm317, %v310, 0.0
      %v328 = vadd.f32 %v326, %v327
      %329 = vadd.xlane.f32.xlu0 %v328
      %v330 = vpop.xlane.xlu0 %329
      %v331 = vrcp.pop 768.0
      %v332 = vmul.f32 %v330, %v331
      %v335 = vunpack.c.l.s4 269488144
      %v336 = vunpack.c.0.s8 %v335
      %v337 = vlaneseq
      %v338 = vshrl.u32 %v337, 7
      %v339 = vsub.s32 %v336, %v338
      %v340 = vrot.slane %v332, %v339
      %v342 = vsub.f32 %v282, %v340
      %v343 = vsub.f32 %v283, %v340
      %v344 = vmul.f32 %v342, %v342
      %v345 = vmul.f32 %v343, %v343
      %v348 = vcombine.high %v344, %v344
      %v350 = vunpack.c.l.s4 1983009808
      %v351 = vunpack.c.0.s8 %v350
      %v352 = vlaneseq
      %v353 = vshrl.u32 %v352, 7
      %v354 = vsub.s32 %v351, %v353
      %v355 = vrot.slane %v344, %v354
      %v357 = vunpack.c.l.s4 1983009808
      %v358 = vunpack.c.0.s8 %v357
      %v359 = vlaneseq
      %v360 = vshrl.u32 %v359, 7
      %v361 = vsub.s32 %v358, %v360
      %v362 = vrot.slane %v348, %v361
      %v363 = vcombine.high %v355, %v355
      %v364 = vcombine.high %v362, %v362
      %v366 = vunpack.c.l.s4 1983009808
      %v367 = vunpack.c.0.s8 %v366
      %v368 = vlaneseq
      %v369 = vshrl.u32 %v368, 7
      %v370 = vsub.s32 %v367, %v369
      %v371 = vrot.slane %v345, %v370
      %v372 = vcombine.high %v371, %v371
      %v379 = vsel %vm317, %v355, 0.0
      %v380 = vsel %vm317, %v363, 0.0
      %v381 = vadd.f32 %v379, %v380
      %v382 = vsel %vm317, %v362, 0.0
      %v383 = vadd.f32 %v381, %v382
      %v384 = vsel %vm317, %v364, 0.0
      %v385 = vadd.f32 %v383, %v384
      %v386 = vsel %vm317, %v371, 0.0
      %v387 = vadd.f32 %v385, %v386
      %v388 = vsel %vm317, %v372, 0.0
      %v389 = vadd.f32 %v387, %v388
      %390 = vadd.xlane.f32.xlu0 %v389
      %v391 = vpop.xlane.xlu0 %390
      %v392 = vmul.f32 %v391, %v331
      %v393 = vadd.f32 %v392, 1e-12
      %v394 = vrsqrt.pop %v393
      %v397 = vunpack.c.l.s4 269488144
      %v398 = vunpack.c.0.s8 %v397
      %v399 = vlaneseq
      %v400 = vshrl.u32 %v399, 7
      %v401 = vsub.s32 %v398, %v400
      %v402 = vrot.slane %v394, %v401
      %v404 = vmul.f32 %v342, %v402
      %v405 = vmul.f32 %v343, %v402
      %406 = vst [vmem:[#allocation4] sm:$0xff] %v404
      %407 = vst [vmem:[#allocation4 + $0x8] sm:$0xf] %v405
      %v408 = vld [vmem:[%s2] sm:$0xff]
      %v409 = vld [vmem:[%s2 + $0x8] sm:$0xff]
      %v410 = vld [vmem:[%s2 + $0x10] sm:$0xff]
      %v411 = vld [vmem:[%s2 + $0x18] sm:$0xff]
      %v412 = vld [vmem:[%s2 + $0x20] sm:$0xff]
      %v413 = vld [vmem:[%s2 + $0x28] sm:$0xff]
      %v414 = vld [vmem:[%s2 + $0x30] sm:$0xff]
      %v415 = vld [vmem:[%s2 + $0x38] sm:$0xff]
      %v416 = vld [vmem:[%s2 + $0x40] sm:$0xff]
      %v417 = vld [vmem:[%s2 + $0x48] sm:$0xff]
      %v418 = vld [vmem:[%s2 + $0x50] sm:$0xff]
      %v419 = vld [vmem:[%s2 + $0x58] sm:$0xff]
      %v420 = vld [vmem:[%s2 + $0x60] sm:$0xff]
      %v421 = vld [vmem:[%s2 + $0x68] sm:$0xff]
      %v422 = vld [vmem:[%s2 + $0x70] sm:$0xff]
      %v423 = vld [vmem:[%s2 + $0x78] sm:$0xff]
      %v424 = vld [vmem:[%s2 + $0x80] sm:$0xff]
      %v425 = vld [vmem:[%s2 + $0x88] sm:$0xff]
      %v426 = vld [vmem:[%s2 + $0x90] sm:$0xff]
      %v427 = vld [vmem:[%s2 + $0x98] sm:$0xff]
      %v428 = vld [vmem:[%s2 + $0xa0] sm:$0xff]
      %v429 = vld [vmem:[%s2 + $0xa8] sm:$0xff]
      %v430 = vld [vmem:[%s2 + $0xb0] sm:$0xff]
      %v431 = vld [vmem:[%s2 + $0xb8] sm:$0xff]
      %v432 = vld [vmem:[%s2 + $0xc0] sm:$0xff]
      %v433 = vld [vmem:[%s2 + $0xc8] sm:$0xff]
      %v434 = vld [vmem:[%s2 + $0xd0] sm:$0xff]
      %v435 = vld [vmem:[%s2 + $0xd8] sm:$0xff]
      %v436 = vld [vmem:[%s2 + $0xe0] sm:$0xff]
      %v437 = vld [vmem:[%s2 + $0xe8] sm:$0xff]
      %v438 = vld [vmem:[%s2 + $0xf0] sm:$0xff]
      %v439 = vld [vmem:[%s2 + $0xf8] sm:$0xff]
      %v440 = vld [vmem:[%s2 + $0x100] sm:$0xff]
      %v441 = vld [vmem:[%s2 + $0x108] sm:$0xff]
      %v442 = vld [vmem:[%s2 + $0x110] sm:$0xff]
      %v443 = vld [vmem:[%s2 + $0x118] sm:$0xff]
      %v444 = vld [vmem:[%s2 + $0x120] sm:$0xff]
      %v445 = vld [vmem:[%s2 + $0x128] sm:$0xff]
      %v446 = vld [vmem:[%s2 + $0x130] sm:$0xff]
      %v447 = vld [vmem:[%s2 + $0x138] sm:$0xff]
      %v448 = vld [vmem:[%s2 + $0x140] sm:$0xff]
      %v449 = vld [vmem:[%s2 + $0x148] sm:$0xff]
      %v450 = vld [vmem:[%s2 + $0x150] sm:$0xff]
      %v451 = vld [vmem:[%s2 + $0x158] sm:$0xff]
      %v452 = vld [vmem:[%s2 + $0x160] sm:$0xff]
      %v453 = vld [vmem:[%s2 + $0x168] sm:$0xff]
      %v454 = vld [vmem:[%s2 + $0x170] sm:$0xff]
      %v455 = vld [vmem:[%s2 + $0x178] sm:$0xff]
      %v456 = vld [vmem:[%s2 + $0x180] sm:$0xff]
      %v457 = vld [vmem:[%s2 + $0x188] sm:$0xff]
      %v458 = vld [vmem:[%s2 + $0x190] sm:$0xff]
      %v459 = vld [vmem:[%s2 + $0x198] sm:$0xff]
      %v460 = vld [vmem:[%s2 + $0x1a0] sm:$0xff]
      %v461 = vld [vmem:[%s2 + $0x1a8] sm:$0xff]
      %v462 = vld [vmem:[%s2 + $0x1b0] sm:$0xff]
      %v463 = vld [vmem:[%s2 + $0x1b8] sm:$0xff]
      %v464 = vld [vmem:[%s2 + $0x1c0] sm:$0xff]
      %v465 = vld [vmem:[%s2 + $0x1c8] sm:$0xff]
      %v466 = vld [vmem:[%s2 + $0x1d0] sm:$0xff]
      %v467 = vld [vmem:[%s2 + $0x1d8] sm:$0xff]
      %v468 = vld [vmem:[%s2 + $0x1e0] sm:$0xff]
      %v469 = vld [vmem:[%s2 + $0x1e8] sm:$0xff]
      %v470 = vld [vmem:[%s2 + $0x1f0] sm:$0xff]
      %v471 = vld [vmem:[%s2 + $0x1f8] sm:$0xff]
      %v472 = vld [vmem:[%s2 + $0x200] sm:$0xff]
      %v473 = vld [vmem:[%s2 + $0x208] sm:$0xff]
      %v474 = vld [vmem:[%s2 + $0x210] sm:$0xff]
      %v475 = vld [vmem:[%s2 + $0x218] sm:$0xff]
      %v476 = vld [vmem:[%s2 + $0x220] sm:$0xff]
      %v477 = vld [vmem:[%s2 + $0x228] sm:$0xff]
      %v478 = vld [vmem:[%s2 + $0x230] sm:$0xff]
      %v479 = vld [vmem:[%s2 + $0x238] sm:$0xff]
      %v480 = vld [vmem:[%s2 + $0x240] sm:$0xff]
      %v481 = vld [vmem:[%s2 + $0x248] sm:$0xff]
      %v482 = vld [vmem:[%s2 + $0x250] sm:$0xff]
      %v483 = vld [vmem:[%s2 + $0x258] sm:$0xff]
      %v484 = vld [vmem:[%s2 + $0x260] sm:$0xff]
      %v485 = vld [vmem:[%s2 + $0x268] sm:$0xff]
      %v486 = vld [vmem:[%s2 + $0x270] sm:$0xff]
      %v487 = vld [vmem:[%s2 + $0x278] sm:$0xff]
      %v488 = vld [vmem:[%s2 + $0x280] sm:$0xff]
      %v489 = vld [vmem:[%s2 + $0x288] sm:$0xff]
      %v490 = vld [vmem:[%s2 + $0x290] sm:$0xff]
      %v491 = vld [vmem:[%s2 + $0x298] sm:$0xff]
      %v492 = vld [vmem:[%s2 + $0x2a0] sm:$0xff]
      %v493 = vld [vmem:[%s2 + $0x2a8] sm:$0xff]
      %v494 = vld [vmem:[%s2 + $0x2b0] sm:$0xff]
      %v495 = vld [vmem:[%s2 + $0x2b8] sm:$0xff]
      %v496 = vld [vmem:[%s2 + $0x2c0] sm:$0xff]
      %v497 = vld [vmem:[%s2 + $0x2c8] sm:$0xff]
      %v498 = vld [vmem:[%s2 + $0x2d0] sm:$0xff]
      %v499 = vld [vmem:[%s2 + $0x2d8] sm:$0xff]
      %v500 = vld [vmem:[%s2 + $0x2e0] sm:$0xff]
      %v501 = vld [vmem:[%s2 + $0x2e8] sm:$0xff]
      %v502 = vld [vmem:[%s2 + $0x2f0] sm:$0xff]
      %v503 = vld [vmem:[%s2 + $0x2f8] sm:$0xff]
      %v504 = vld [vmem:[%s3] sm:$0x1]
      %v506 = vlaneseq
      %v507 = vshrl.u32 %v506, 7
      %v508 = vsub.s32 0, %v507
      %v509 = vrot.slane %v504, %v508
      %v513 = vcombine.high %v404, %v404
      %v515 = vunpack.c.l.s4 1983009808
      %v516 = vunpack.c.0.s8 %v515
      %v517 = vlaneseq
      %v518 = vshrl.u32 %v517, 7
      %v519 = vsub.s32 %v516, %v518
      %v520 = vrot.slane %v404, %v519
      %v522 = vunpack.c.l.s4 1983009808
      %v523 = vunpack.c.0.s8 %v522
      %v524 = vlaneseq
      %v525 = vshrl.u32 %v524, 7
      %v526 = vsub.s32 %v523, %v525
      %v527 = vrot.slane %v513, %v526
      %v528 = vcombine.high %v520, %v520
      %v529 = vcombine.high %v527, %v527
      %v531 = vunpack.c.l.s4 1983009808
      %v532 = vunpack.c.0.s8 %v531
      %v533 = vlaneseq
      %v534 = vshrl.u32 %v533, 7
      %v535 = vsub.s32 %v532, %v534
      %v536 = vrot.slane %v405, %v535
      %v537 = vcombine.high %v536, %v536
      %544 = vmatprep.subr.mxu0 0.0
      %545 = vmatpush1.msra.mxu0 %v423
      %546 = vmatprep.subr.mxu0 0.0
      %547 = vmatpush1.msra.mxu0 %v422
      %548 = vmatprep.subr.mxu0 0.0
      %549 = vmatpush1.msra.mxu0 %v421
      %550 = vmatprep.subr.mxu0 0.0
      %551 = vmatpush1.msra.mxu0 %v420
      %552 = vmatprep.subr.mxu0 0.0
      %553 = vmatpush1.msra.mxu0 %v419
      %554 = vmatprep.subr.mxu0 0.0
      %555 = vmatpush1.msra.mxu0 %v418
      %556 = vmatprep.subr.mxu0 0.0
      %557 = vmatpush1.msra.mxu0 %v417
      %558 = vmatprep.subr.mxu0 0.0
      %559 = vmatpush1.msra.mxu0 %v416
      %560 = vmatprep.subr.mxu0 0.0
      %561 = vmatpush1.msra.mxu0 %v415
      %562 = vmatprep.subr.mxu0 0.0
      %563 = vmatpush1.msra.mxu0 %v414
      %564 = vmatprep.subr.mxu0 0.0
      %565 = vmatpush1.msra.mxu0 %v413
      %566 = vmatprep.subr.mxu0 0.0
      %567 = vmatpush1.msra.mxu0 %v412
      %568 = vmatprep.subr.mxu0 0.0
      %569 = vmatpush1.msra.mxu0 %v411
      %570 = vmatprep.subr.mxu0 0.0
      %571 = vmatpush1.msra.mxu0 %v410
      %572 = vmatprep.subr.mxu0 0.0
      %573 = vmatpush1.msra.mxu0 %v409
      %574 = vmatprep.subr.mxu0 0.0
      %575 = vmatpush1.msra.mxu0 %v408
      %576 = vmatprep.subr.mxu0 0.0
      %577 = vmatpush2.msra.mxu0 %v439
      %578 = vmatprep.subr.mxu0 0.0
      %579 = vmatpush2.msra.mxu0 %v438
      %580 = vmatprep.subr.mxu0 0.0
      %581 = vmatpush2.msra.mxu0 %v437
      %582 = vmatprep.subr.mxu0 0.0
      %583 = vmatpush2.msra.mxu0 %v436
      %584 = vmatprep.subr.mxu0 0.0
      %585 = vmatpush2.msra.mxu0 %v435
      %586 = vmatprep.subr.mxu0 0.0
      %587 = vmatpush2.msra.mxu0 %v434
      %588 = vmatprep.subr.mxu0 0.0
      %589 = vmatpush2.msra.mxu0 %v433
      %590 = vmatprep.subr.mxu0 0.0
      %591 = vmatpush2.msra.mxu0 %v432
      %592 = vmatprep.subr.mxu0 0.0
      %593 = vmatpush2.msra.mxu0 %v431
      %594 = vmatprep.subr.mxu0 0.0
      %595 = vmatpush2.msra.mxu0 %v430
      %596 = vmatprep.subr.mxu0 0.0
      %597 = vmatpush2.msra.mxu0 %v429
      %598 = vmatprep.subr.mxu0 0.0
      %599 = vmatpush2.msra.mxu0 %v428
      %600 = vmatprep.subr.mxu0 0.0
      %601 = vmatpush2.msra.mxu0 %v427
      %602 = vmatprep.subr.mxu0 0.0
      %603 = vmatpush2.msra.mxu0 %v426
      %604 = vmatprep.subr.mxu0 0.0
      %605 = vmatpush2.msra.mxu0 %v425
      %606 = vmatprep.subr.mxu0 0.0
      %607 = vmatpush2.msra.mxu0 %v424
      %608 = vmatprep.mubr.f32.mxu0 %v528
      %609 = vmatmul.mubr.f32.gmra.mxu0 %v520
      %v610 = vpop.f32.mrf.mxu0
      %v611 = vadd.f32 %v509, %v610
      %v612 = vpop.f32.mrf.mxu0
      %613 = vdwg.mxu0
      %614 = vmatprep.subr.mxu0 0.0
      %615 = vmatpush1.msra.mxu0 %v455
      %616 = vmatprep.subr.mxu0 0.0
      %617 = vmatpush1.msra.mxu0 %v454
      %618 = vmatprep.subr.mxu0 0.0
      %619 = vmatpush1.msra.mxu0 %v453
      %620 = vmatprep.subr.mxu0 0.0
      %621 = vmatpush1.msra.mxu0 %v452
      %622 = vmatprep.subr.mxu0 0.0
      %623 = vmatpush1.msra.mxu0 %v451
      %624 = vmatprep.subr.mxu0 0.0
      %625 = vmatpush1.msra.mxu0 %v450
      %626 = vmatprep.subr.mxu0 0.0
      %627 = vmatpush1.msra.mxu0 %v449
      %628 = vmatprep.subr.mxu0 0.0
      %629 = vmatpush1.msra.mxu0 %v448
      %630 = vmatprep.subr.mxu0 0.0
      %631 = vmatpush1.msra.mxu0 %v447
      %632 = vmatprep.subr.mxu0 0.0
      %633 = vmatpush1.msra.mxu0 %v446
      %634 = vmatprep.subr.mxu0 0.0
      %635 = vmatpush1.msra.mxu0 %v445
      %636 = vmatprep.subr.mxu0 0.0
      %637 = vmatpush1.msra.mxu0 %v444
      %638 = vmatprep.subr.mxu0 0.0
      %639 = vmatpush1.msra.mxu0 %v443
      %640 = vmatprep.subr.mxu0 0.0
      %641 = vmatpush1.msra.mxu0 %v442
      %642 = vmatprep.subr.mxu0 0.0
      %643 = vmatpush1.msra.mxu0 %v441
      %644 = vmatprep.subr.mxu0 0.0
      %645 = vmatpush1.msra.mxu0 %v440
      %646 = vmatprep.subr.mxu0 0.0
      %647 = vmatpush2.msra.mxu0 %v471
      %648 = vmatprep.subr.mxu0 0.0
      %649 = vmatpush2.msra.mxu0 %v470
      %650 = vmatprep.subr.mxu0 0.0
      %651 = vmatpush2.msra.mxu0 %v469
      %652 = vmatprep.subr.mxu0 0.0
      %653 = vmatpush2.msra.mxu0 %v468
      %654 = vmatprep.subr.mxu0 0.0
      %655 = vmatpush2.msra.mxu0 %v467
      %656 = vmatprep.subr.mxu0 0.0
      %657 = vmatpush2.msra.mxu0 %v466
      %658 = vmatprep.subr.mxu0 0.0
      %659 = vmatpush2.msra.mxu0 %v465
      %660 = vmatprep.subr.mxu0 0.0
      %661 = vmatpush2.msra.mxu0 %v464
      %662 = vmatprep.subr.mxu0 0.0
      %663 = vmatpush2.msra.mxu0 %v463
      %664 = vmatprep.subr.mxu0 0.0
      %665 = vmatpush2.msra.mxu0 %v462
      %666 = vmatprep.subr.mxu0 0.0
      %667 = vmatpush2.msra.mxu0 %v461
      %668 = vmatprep.subr.mxu0 0.0
      %669 = vmatpush2.msra.mxu0 %v460
      %670 = vmatprep.subr.mxu0 0.0
      %671 = vmatpush2.msra.mxu0 %v459
      %672 = vmatprep.subr.mxu0 0.0
      %673 = vmatpush2.msra.mxu0 %v458
      %674 = vmatprep.subr.mxu0 0.0
      %675 = vmatpush2.msra.mxu0 %v457
      %676 = vmatprep.subr.mxu0 0.0
      %677 = vmatpush2.msra.mxu0 %v456
      %678 = vmatprep.mubr.f32.mxu0 %v529
      %679 = vmatmul.mubr.f32.gmra.mxu0 %v527
      %v680 = vpop.f32.mrf.mxu0
      %v681 = vadd.f32 %v611, %v680
      %v682 = vpop.f32.mrf.mxu0
      %683 = vdwg.mxu0
      %684 = vmatprep.subr.mxu0 0.0
      %685 = vmatpush1.msra.mxu0 %v487
      %686 = vmatprep.subr.mxu0 0.0
      %687 = vmatpush1.msra.mxu0 %v486
      %688 = vmatprep.subr.mxu0 0.0
      %689 = vmatpush1.msra.mxu0 %v485
      %690 = vmatprep.subr.mxu0 0.0
      %691 = vmatpush1.msra.mxu0 %v484
      %692 = vmatprep.subr.mxu0 0.0
      %693 = vmatpush1.msra.mxu0 %v483
      %694 = vmatprep.subr.mxu0 0.0
      %695 = vmatpush1.msra.mxu0 %v482
      %696 = vmatprep.subr.mxu0 0.0
      %697 = vmatpush1.msra.mxu0 %v481
      %698 = vmatprep.subr.mxu0 0.0
      %699 = vmatpush1.msra.mxu0 %v480
      %700 = vmatprep.subr.mxu0 0.0
      %701 = vmatpush1.msra.mxu0 %v479
      %702 = vmatprep.subr.mxu0 0.0
      %703 = vmatpush1.msra.mxu0 %v478
      %704 = vmatprep.subr.mxu0 0.0
      %705 = vmatpush1.msra.mxu0 %v477
      %706 = vmatprep.subr.mxu0 0.0
      %707 = vmatpush1.msra.mxu0 %v476
      %708 = vmatprep.subr.mxu0 0.0
      %709 = vmatpush1.msra.mxu0 %v475
      %710 = vmatprep.subr.mxu0 0.0
      %711 = vmatpush1.msra.mxu0 %v474
      %712 = vmatprep.subr.mxu0 0.0
      %713 = vmatpush1.msra.mxu0 %v473
      %714 = vmatprep.subr.mxu0 0.0
      %715 = vmatpush1.msra.mxu0 %v472
      %716 = vmatprep.subr.mxu0 0.0
      %717 = vmatpush2.msra.mxu0 %v503
      %718 = vmatprep.subr.mxu0 0.0
      %719 = vmatpush2.msra.mxu0 %v502
      %720 = vmatprep.subr.mxu0 0.0
      %721 = vmatpush2.msra.mxu0 %v501
      %722 = vmatprep.subr.mxu0 0.0
      %723 = vmatpush2.msra.mxu0 %v500
      %724 = vmatprep.subr.mxu0 0.0
      %725 = vmatpush2.msra.mxu0 %v499
      %726 = vmatprep.subr.mxu0 0.0
      %727 = vmatpush2.msra.mxu0 %v498
      %728 = vmatprep.subr.mxu0 0.0
      %729 = vmatpush2.msra.mxu0 %v497
      %730 = vmatprep.subr.mxu0 0.0
      %731 = vmatpush2.msra.mxu0 %v496
      %732 = vmatprep.subr.mxu0 0.0
      %733 = vmatpush2.msra.mxu0 %v495
      %734 = vmatprep.subr.mxu0 0.0
      %735 = vmatpush2.msra.mxu0 %v494
      %736 = vmatprep.subr.mxu0 0.0
      %737 = vmatpush2.msra.mxu0 %v493
      %738 = vmatprep.subr.mxu0 0.0
      %739 = vmatpush2.msra.mxu0 %v492
      %740 = vmatprep.subr.mxu0 0.0
      %741 = vmatpush2.msra.mxu0 %v491
      %742 = vmatprep.subr.mxu0 0.0
      %743 = vmatpush2.msra.mxu0 %v490
      %744 = vmatprep.subr.mxu0 0.0
      %745 = vmatpush2.msra.mxu0 %v489
      %746 = vmatprep.subr.mxu0 0.0
      %747 = vmatpush2.msra.mxu0 %v488
      %748 = vmatprep.mubr.f32.mxu0 %v537
      %749 = vmatmul.mubr.f32.gmra.mxu0 %v536
      %v750 = vpop.f32.mrf.mxu0
      %v751 = vadd.f32 %v681, %v750
      %v752 = vpop.f32.mrf.mxu0
      %753 = vdwg.mxu0
      %v754 = vtanh.pop %v751
      %v755 = vld [vmem:[%s4] sm:$0xff]
      %v756 = vld [vmem:[%s4 + $0x8] sm:$0xff]
      %v757 = vld [vmem:[%s4 + $0x10] sm:$0xff]
      %v758 = vld [vmem:[%s4 + $0x18] sm:$0xff]
      %v759 = vld [vmem:[%s4 + $0x20] sm:$0xff]
      %v760 = vld [vmem:[%s4 + $0x28] sm:$0xff]
      %v761 = vld [vmem:[%s4 + $0x30] sm:$0xff]
      %v762 = vld [vmem:[%s4 + $0x38] sm:$0xff]
      %v763 = vld [vmem:[%s5] sm:$0x1]
      %v765 = vlaneseq
      %v766 = vshrl.u32 %v765, 7
      %v767 = vsub.s32 0, %v766
      %v768 = vrot.slane %v763, %v767
      %vm770 = vcmask 523264
      %v772 = vsel %vm770, %v754, 0
      %774 = vmatprep.subr.mxu0 0.0
      %775 = vmatpush1.msra.mxu0 0.0
      %776 = vmatprep.subr.mxu0 0.0
      %777 = vmatpush1.msra.mxu0 0.0
      %778 = vmatprep.subr.mxu0 0.0
      %779 = vmatpush1.msra.mxu0 0.0
      %780 = vmatprep.subr.mxu0 0.0
      %781 = vmatpush1.msra.mxu0 0.0
      %782 = vmatprep.subr.mxu0 0.0
      %783 = vmatpush1.msra.mxu0 0.0
      %784 = vmatprep.subr.mxu0 0.0
      %785 = vmatpush1.msra.mxu0 0.0
      %786 = vmatprep.subr.mxu0 0.0
      %787 = vmatpush1.msra.mxu0 0.0
      %788 = vmatprep.subr.mxu0 0.0
      %789 = vmatpush1.msra.mxu0 0.0
      %790 = vmatprep.subr.mxu0 0.0
      %791 = vmatpush1.msra.mxu0 %v762
      %792 = vmatprep.subr.mxu0 0.0
      %793 = vmatpush1.msra.mxu0 %v761
      %794 = vmatprep.subr.mxu0 0.0
      %795 = vmatpush1.msra.mxu0 %v760
      %796 = vmatprep.subr.mxu0 0.0
      %797 = vmatpush1.msra.mxu0 %v759
      %798 = vmatprep.subr.mxu0 0.0
      %799 = vmatpush1.msra.mxu0 %v758
      %800 = vmatprep.subr.mxu0 0.0
      %801 = vmatpush1.msra.mxu0 %v757
      %802 = vmatprep.subr.mxu0 0.0
      %803 = vmatpush1.msra.mxu0 %v756
      %804 = vmatprep.subr.mxu0 0.0
      %805 = vmatpush1.msra.mxu0 %v755
      %806 = vmatprep.subr.mxu0 0.0
      %807 = vmatpush2.msra.mxu0 0.0
      %808 = vmatprep.subr.mxu0 0.0
      %809 = vmatpush2.msra.mxu0 0.0
      %810 = vmatprep.subr.mxu0 0.0
      %811 = vmatpush2.msra.mxu0 0.0
      %812 = vmatprep.subr.mxu0 0.0
      %813 = vmatpush2.msra.mxu0 0.0
      %814 = vmatprep.subr.mxu0 0.0
      %815 = vmatpush2.msra.mxu0 0.0
      %816 = vmatprep.subr.mxu0 0.0
      %817 = vmatpush2.msra.mxu0 0.0
      %818 = vmatprep.subr.mxu0 0.0
      %819 = vmatpush2.msra.mxu0 0.0
      %820 = vmatprep.subr.mxu0 0.0
      %821 = vmatpush2.msra.mxu0 0.0
      %822 = vmatprep.subr.mxu0 0.0
      %823 = vmatpush2.msra.mxu0 0.0
      %824 = vmatprep.subr.mxu0 0.0
      %825 = vmatpush2.msra.mxu0 0.0
      %826 = vmatprep.subr.mxu0 0.0
      %827 = vmatpush2.msra.mxu0 0.0
      %828 = vmatprep.subr.mxu0 0.0
      %829 = vmatpush2.msra.mxu0 0.0
      %830 = vmatprep.subr.mxu0 0.0
      %831 = vmatpush2.msra.mxu0 0.0
      %832 = vmatprep.subr.mxu0 0.0
      %833 = vmatpush2.msra.mxu0 0.0
      %834 = vmatprep.subr.mxu0 0.0
      %835 = vmatpush2.msra.mxu0 0.0
      %836 = vmatprep.subr.mxu0 0.0
      %837 = vmatpush2.msra.mxu0 0.0
      %838 = vmatprep.mubr.f32.mxu0 0.0
      %839 = vmatmul.mubr.f32.gmra.mxu0 %v772
      %v840 = vpop.f32.mrf.mxu0
      %v841 = vadd.f32 %v768, %v840
      %v842 = vpop.f32.mrf.mxu0
      %843 = vdwg.mxu0
      %844 = vst [vmem:[#allocation6] sm:$0x3] 0.0
      %vm845 = vcmask 517120
      %846 = vst.msk [vmem:[#allocation6] sm:$0x3] %vm845, %v754
      %848 = vrot.lane.b32.xlu0 %v841, 64
      %v849 = vpop.permute.xlu0 %848
      %vm851 = vcmask 574976
      %852 = vst.msk [vmem:[#allocation6] sm:$0x3] %vm851, %v849
    $region33: #{tpu_custom_call.1} parent=1 // pred_fallthru
      _
    // Predicated region
    $region34: #{tpu_custom_call.1} parent=1 // pred_check
      _
    $region35: #{tpu_custom_call.1} parent=1 // pred_check_branch
      %854 = sbr.rel (0) target = $region37
    $region36: #{tpu_custom_call.1} parent=1 // pred_region
      %s856 = ssub.s32 192, 192
      %857 = vsyncadd [#allocation5], %s856
      %s859 = sshll.u32 [#allocation4], 4
      %s860 = int_to_ptr.vmem [resolvable:$true] %s859
      %862 = dma.vmem_to_hbm [thread:$0]  %s860, 192, %s6, [#allocation5]
    $region37: #{tpu_custom_call.1} parent=1 // pred_fallthru
      _
    // Predicated region
    $region38: #{tpu_custom_call.1} parent=1 // pred_check
      _
    $region39: #{tpu_custom_call.1} parent=1 // pred_check_branch
      %864 = sbr.rel (0) target = $region41
    $region40: #{tpu_custom_call.1} parent=1 // pred_region
      %s866 = ssub.s32 32, 32
      %867 = vsyncadd [#allocation7], %s866
      %s869 = sshll.u32 [#allocation6], 4
      %s870 = int_to_ptr.vmem [resolvable:$true] %s869
      %872 = dma.vmem_to_hbm [thread:$0]  %s870, 32, %s7, [#allocation7]
    $region41: #{tpu_custom_call.1} parent=1 // pred_fallthru
      _
    // Predicated region
    $region42: #{tpu_custom_call.1} parent=1 // pred_check
      _
    $region43: #{tpu_custom_call.1} parent=1 // pred_check_branch
      %874 = sbr.rel (0) target = $region45
    $region44: #{tpu_custom_call.1} parent=1 // pred_region
      %875 = dma.done [#allocation5], 192
    $region45: #{tpu_custom_call.1} parent=1 // pred_fallthru
      _
    // Predicated region
    $region46: #{tpu_custom_call.1} parent=1 // pred_check
      _
    $region47: #{tpu_custom_call.1} parent=1 // pred_check_branch
      %877 = sbr.rel (0) target = $region49
    $region48: #{tpu_custom_call.1} parent=1 // pred_region
      %878 = dma.done [#allocation7], 32
    $region49: #{tpu_custom_call.1} parent=1 // pred_fallthru
      _
    %879 = vsyncpa [#allocation5], 1
    %880 = vsyncpa [#allocation7], 1

</llo_original>
